<compile_context>
chip_gen: v5e
topology: v5e:2x2
jax: 0.10.0
libtpu: 0.0.40
codegen_flags: <defaults>
</compile_context>

<pallas_src>
import functools
import math

import jax
import jax.numpy as jnp
import numpy as np
from jax import lax
from jax.experimental import pallas as pl
from jax.experimental.pallas import tpu as pltpu

TM = 128   # row tile ("parallel" axis); keep N//TM >= 2 so v7x megacore can shard rows
TN = 256   # col tile (reduction axis), lane-dense multiple of 128; keep <= typical
           # per-batch point count so active-tile compaction still prunes tiles


def _sampling_norm_kernel(col_ids_ref, ncols_ref,            # scalar prefetch (SMEM)
                          pos_i_ref, pos_jt_ref, w_ref,      # inputs (VMEM)
                          out_ref,                           # output (VMEM)
                          acc_ref,                           # scratch (VMEM)
                          *, c, d_pos, acc_w):
    i = pl.program_id(0)
    j = pl.program_id(1)

    @pl.when(j == 0)
    def _():
        acc_ref[...] = jnp.zeros_like(acc_ref)

    # Padded column slots (j >= ncols[i]) repeat the previous block index, so they
    # cost neither DMA nor compute.
    @pl.when(j < ncols_ref[i])
    def _():
        pos_i = pos_i_ref[...].astype(jnp.float32)      # (TM, D+1)  row points
        pos_jt = pos_jt_ref[...].astype(jnp.float32)    # (D+1, TN)  lane-dense col points
        tn = pos_jt.shape[1]

        if d_pos >= 8:
            # MXU gram path for wide coordinate dims; the scaled batch coordinate is
            # excluded from the gram and added exactly on the VPU (no cancellation).
            a = pos_i[:, :d_pos]
            bt = pos_jt[:d_pos, :]
            gram = lax.dot_general(a, bt, (((1,), (0,)), ((), ())),
                                   preferred_element_type=jnp.float32)   # (TM, TN)
            sq_i = jnp.sum(a * a, axis=1, keepdims=True)                  # (TM, 1)
            sq_j = jnp.sum(bt * bt, axis=0, keepdims=True)                # (1, TN)
            dist2 = jnp.maximum(sq_i + sq_j - 2.0 * gram, 0.0)
            db = pos_i[:, d_pos:d_pos + 1] - pos_jt[d_pos:d_pos + 1, :]
            dist2 = dist2 + db * db
        else:
            # Direct differences on the VPU: exact reference numerics, no MXU padding.
            dist2 = None
            for dd in range(d_pos + 1):                 # static unroll over D+1 coords
                diff = pos_i[:, dd:dd + 1] - pos_jt[dd:dd + 1, :]         # (TM, TN)
                sq = diff * diff
                dist2 = sq if dist2 is None else dist2 + sq

        # Batch mask is folded into the last coordinate: cross-batch pairs get an
        # exponent <= -200 and underflow to exactly 0 (matches the masked reference).
        k = jnp.exp(dist2 * c)                          # c = -1/(2 sigma^2) < 0

        # Lane-dense accumulation: static lane-slab adds on the VPU only; the single
        # cross-lane (XLU) reduce is deferred to the per-row-tile finalize below.
        partial = k[:, 0:acc_w]
        for s in range(1, tn // acc_w):
            partial = partial + k[:, s * acc_w:(s + 1) * acc_w]
        acc_ref[...] += partial

    @pl.when(j == pl.num_programs(1) - 1)
    def _():
        denom = jnp.sum(acc_ref[...], axis=-1, keepdims=True)             # (TM, 1)
        out_ref[...] = (w_ref[...] *
                        pl.reciprocal(denom, approx=False)).astype(out_ref.dtype)
        # TODO(synk): output stays (TM, 1) (lane-sparse, one masked store per row
        # tile); a (1, TM) lane-dense output needs an in-kernel transpose and is
        # low-impact at these sizes.


def sampling_normalization(positions, weights, batch, sigma, *, tm=TM, tn=TN):
    """positions: [N, D] f32, weights: [N] f32, batch: [N] int, sigma: python float."""
    N, D = positions.shape
    tm = min(tm, N)
    tn = min(tn, N)
    assert N % tm == 0 and N % tn == 0, "N must be a multiple of the tile sizes"
    nR, nC = N // tm, N // tn

    acc_w = 128 if tn % 128 == 0 else tn
    assert tn % acc_w == 0, "column tile must be a multiple of 128 (or <= 128)"

    # Gaussian scale (baked into the kernel) and the batch-separation coordinate
    # scale: c * (bsep * |db|)^2 <= -200 for any |db| >= 1  ->  exp underflows to 0.
    c = -1.0 / (2.0 * float(sigma) * float(sigma))
    bsep = math.sqrt(200.0 / abs(c))

    pos = positions.astype(jnp.float32)
    b_coord = (batch.astype(jnp.float32) * bsep)[:, None]
    pos_aug = jnp.concatenate([pos, b_coord], axis=1)     # (N, D+1)
    pos_aug_t = pos_aug.T                                 # (D+1, N) lane-dense columns
    w_rows = weights.reshape(N, 1).astype(jnp.float32)

    # Active-tile compaction (host side): list, per row tile, the column tiles whose
    # batch-id range can intersect it.  Needs concrete batch ids; under jit we fall
    # back to the full column grid (still correct, just no pruning).
    if isinstance(batch, jax.core.Tracer):
        col_ids = np.tile(np.arange(nC, dtype=np.int32), (nR, 1))
        ncols = np.full((nR,), nC, np.int32)
        maxc = nC
    else:
        b_host = np.asarray(jax.device_get(batch)).astype(np.int64)
        rmin = b_host.reshape(nR, tm).min(axis=1)
        rmax = b_host.reshape(nR, tm).max(axis=1)
        cmin = b_host.reshape(nC, tn).min(axis=1)
        cmax = b_host.reshape(nC, tn).max(axis=1)
        active = [[j for j in range(nC) if rmin[i] <= cmax[j] and cmin[j] <= rmax[i]]
                  for i in range(nR)]
        ncols = np.array([len(a) for a in active], np.int32)
        maxc = int(ncols.max())
        # padded slots repeat the last valid column -> same block index -> no re-DMA
        col_ids = np.stack([np.pad(np.array(a, np.int32), (0, maxc - len(a)), mode="edge")
                            for a in active]).astype(np.int32)

    col_ids_flat = jnp.asarray(col_ids.reshape(-1))       # 1-D SMEM (avoids 2-D padding)
    ncols_j = jnp.asarray(ncols)

    kernel = functools.partial(_sampling_norm_kernel, c=c, d_pos=D, acc_w=acc_w)

    grid = (nR, maxc)
    out = pl.pallas_call(
        kernel,
        out_shape=jax.ShapeDtypeStruct((N, 1), jnp.float32),
        grid_spec=pltpu.PrefetchScalarGridSpec(
            num_scalar_prefetch=2,                        # col_ids_flat, ncols
            grid=grid,
            in_specs=[
                pl.BlockSpec((tm, D + 1), lambda i, j, cids, nc: (i, 0)),     # rows
                pl.BlockSpec((D + 1, tn),
                             lambda i, j, cids, nc: (0, cids[i * maxc + j])),  # active cols
                pl.BlockSpec((tm, 1), lambda i, j, cids, nc: (i, 0)),         # weights
            ],
            out_specs=pl.BlockSpec((tm, 1), lambda i, j, cids, nc: (i, 0)),
            scratch_shapes=[pltpu.VMEM((tm, acc_w), jnp.float32)],
        ),
        compiler_params=pltpu.CompilerParams(
            dimension_semantics=("parallel", "arbitrary")),
    )(col_ids_flat, ncols_j, pos_aug, pos_aug_t, w_rows)
    return out.reshape(N)


def _reference(positions, weights, batch, sigma):
    d2 = jnp.sum((positions[:, None, :] - positions[None, :, :]) ** 2, axis=-1)
    K = jnp.exp(-d2 / (2.0 * sigma * sigma))
    K = jnp.where(batch[:, None] == batch[None, :], K, 0.0)
    return weights / K.sum(-1)


if __name__ == "__main__":
    key = jax.random.PRNGKey(0)
    k_pos, k_w = jax.random.split(key)

    N, D = 512, 2                        # 512 sampled mixture points in 2-D (MTT positions)
    positions = jax.random.normal(k_pos, (N, D), dtype=jnp.float32) * 3.0
    weights = jax.random.uniform(k_w, (N,), dtype=jnp.float32, minval=0.1, maxval=1.0)
    # two contiguous batch elements, 256 points each
    batch = jnp.concatenate([jnp.zeros((N // 2,), jnp.int32),
                             jnp.ones((N // 2,), jnp.int32)])
    sigma = 0.75                         # deterministic kernel parameter init

    out = sampling_normalization(positions, weights, batch, sigma)
    out = jax.block_until_ready(out)

    ref = _reference(positions, weights, batch, sigma)
    assert out.shape == (N,)
    assert jnp.allclose(out, ref, rtol=1e-5, atol=1e-6), (out, ref)

    print("KERNEL_OK")
</pallas_src>

<mosaic_0001>
module attributes {stable_mosaic.version = 11 : i64} {
  func.func @_sampling_norm_kernel(%arg0: i32, %arg1: i32, %arg2: memref<4xi32, #tpu.memory_space<smem>>, %arg3: memref<4xi32, #tpu.memory_space<smem>>, %arg4: memref<128x3xf32, #tpu.memory_space<vmem>>, %arg5: memref<3x256xf32, #tpu.memory_space<vmem>>, %arg6: memref<128x1xf32, #tpu.memory_space<vmem>>, %arg7: memref<128x1xf32, #tpu.memory_space<vmem>>, %arg8: memref<128x128xf32, #tpu.memory_space<vmem>>) attributes {dimension_semantics = [#tpu.dimension_semantics<parallel>, #tpu.dimension_semantics<arbitrary>], iteration_bounds = array<i64: 4, 1>, scalar_prefetch = 2 : i64, scratch_operands = 1 : i64, tpu.core_type = #tpu.core_type<tc>, window_params = [{transform_indices = @transform_0, window_bounds = array<i64: 128, 3>}, {transform_indices = @transform_1, window_bounds = array<i64: 3, 256>}, {transform_indices = @transform_2, window_bounds = array<i64: 128, 1>}, {transform_indices = @transform_3, window_bounds = array<i64: 128, 1>}]} {
    %c0_i32 = arith.constant 0 : i32
    %0 = arith.cmpi eq, %arg1, %c0_i32 : i32
    %1 = arith.extui %0 : i1 to i32
    %c0_i32_0 = arith.constant 0 : i32
    %2 = arith.cmpi ne, %1, %c0_i32_0 : i32
    scf.if %2 {
      %cst = arith.constant 0.000000e+00 : f32
      %11 = vector.broadcast %cst : f32 to vector<128x128xf32>
      %c0 = arith.constant 0 : index
      %c0_4 = arith.constant 0 : index
      %12 = vector.load %arg8[%c0, %c0_4] : memref<128x128xf32, #tpu.memory_space<vmem>>, vector<128x128xf32>
      tpu.vector_store %arg8[%c0, %c0_4], %11 {strides = array<i32>} : memref<128x128xf32, #tpu.memory_space<vmem>>, vector<128x128xf32>,
    } else {
    }
    %3 = arith.index_cast %arg0 : i32 to index
    %4 = memref.load %arg3[%3] : memref<4xi32, #tpu.memory_space<smem>>
    %5 = arith.cmpi slt, %arg1, %4 : i32
    %6 = arith.extui %5 : i1 to i32
    %c0_i32_1 = arith.constant 0 : i32
    %7 = arith.cmpi ne, %6, %c0_i32_1 : i32
    scf.if %7 {
      %c0 = arith.constant 0 : index
      %c0_4 = arith.constant 0 : index
      %11 = vector.load %arg4[%c0, %c0_4] : memref<128x3xf32, #tpu.memory_space<vmem>>, vector<128x3xf32>
      %c0_5 = arith.constant 0 : index
      %c0_6 = arith.constant 0 : index
      %12 = vector.load %arg5[%c0_5, %c0_6] : memref<3x256xf32, #tpu.memory_space<vmem>>, vector<3x256xf32>
      %13 = vector.extract_strided_slice %11 {offsets = [0, 0], sizes = [128, 1], strides = [1, 1]} : vector<128x3xf32> to vector<128x1xf32>
      %14 = vector.extract_strided_slice %12 {offsets = [0, 0], sizes = [1, 256], strides = [1, 1]} : vector<3x256xf32> to vector<1x256xf32>
      %15 = vector.broadcast %13 : vector<128x1xf32> to vector<128x256xf32>
      %16 = vector.broadcast %14 : vector<1x256xf32> to vector<128x256xf32>
      %17 = arith.subf %15, %16 : vector<128x256xf32>
      %18 = arith.mulf %17, %17 : vector<128x256xf32>
      %19 = vector.extract_strided_slice %11 {offsets = [0, 1], sizes = [128, 1], strides = [1, 1]} : vector<128x3xf32> to vector<128x1xf32>
      %20 = vector.extract_strided_slice %12 {offsets = [1, 0], sizes = [1, 256], strides = [1, 1]} : vector<3x256xf32> to vector<1x256xf32>
      %21 = vector.broadcast %19 : vector<128x1xf32> to vector<128x256xf32>
      %22 = vector.broadcast %20 : vector<1x256xf32> to vector<128x256xf32>
      %23 = arith.subf %21, %22 : vector<128x256xf32>
      %24 = arith.mulf %23, %23 : vector<128x256xf32>
      %25 = arith.addf %18, %24 : vector<128x256xf32>
      %26 = vector.extract_strided_slice %11 {offsets = [0, 2], sizes = [128, 1], strides = [1, 1]} : vector<128x3xf32> to vector<128x1xf32>
      %27 = vector.extract_strided_slice %12 {offsets = [2, 0], sizes = [1, 256], strides = [1, 1]} : vector<3x256xf32> to vector<1x256xf32>
      %28 = vector.broadcast %26 : vector<128x1xf32> to vector<128x256xf32>
      %29 = vector.broadcast %27 : vector<1x256xf32> to vector<128x256xf32>
      %30 = arith.subf %28, %29 : vector<128x256xf32>
      %31 = arith.mulf %30, %30 : vector<128x256xf32>
      %32 = arith.addf %25, %31 : vector<128x256xf32>
      %cst = arith.constant -0.888888895 : f32
      %33 = vector.broadcast %cst : f32 to vector<128x256xf32>
      %34 = arith.mulf %32, %33 : vector<128x256xf32>
      %35 = math.exp %34 : vector<128x256xf32>
      %36 = vector.extract_strided_slice %35 {offsets = [0, 0], sizes = [128, 128], strides = [1, 1]} : vector<128x256xf32> to vector<128x128xf32>
      %37 = vector.extract_strided_slice %35 {offsets = [0, 128], sizes = [128, 128], strides = [1, 1]} : vector<128x256xf32> to vector<128x128xf32>
      %38 = arith.addf %36, %37 : vector<128x128xf32>
      %c0_7 = arith.constant 0 : index
      %c0_8 = arith.constant 0 : index
      %39 = vector.load %arg8[%c0_7, %c0_8] : memref<128x128xf32, #tpu.memory_space<vmem>>, vector<128x128xf32>
      %40 = arith.addf %39, %38 : vector<128x128xf32>
      %c0_9 = arith.constant 0 : index
      %c0_10 = arith.constant 0 : index
      %41 = vector.load %arg8[%c0_9, %c0_10] : memref<128x128xf32, #tpu.memory_space<vmem>>, vector<128x128xf32>
      tpu.vector_store %arg8[%c0_9, %c0_10], %40 {strides = array<i32>} : memref<128x128xf32, #tpu.memory_space<vmem>>, vector<128x128xf32>,
    } else {
    }
    %c0_i32_2 = arith.constant 0 : i32
    %8 = arith.cmpi eq, %arg1, %c0_i32_2 : i32
    %9 = arith.extui %8 : i1 to i32
    %c0_i32_3 = arith.constant 0 : i32
    %10 = arith.cmpi ne, %9, %c0_i32_3 : i32
    scf.if %10 {
      %c0 = arith.constant 0 : index
      %c0_4 = arith.constant 0 : index
      %11 = vector.load %arg8[%c0, %c0_4] : memref<128x128xf32, #tpu.memory_space<vmem>>, vector<128x128xf32>
      %cst = arith.constant dense<0.000000e+00> : vector<128xf32>
      %12 = vector.multi_reduction <add>, %11, %cst [1] : vector<128x128xf32> to vector<128xf32>
      %13 = vector.shape_cast %12 : vector<128xf32> to vector<128x1xf32>
      %c0_5 = arith.constant 0 : index
      %c0_6 = arith.constant 0 : index
      %14 = vector.load %arg6[%c0_5, %c0_6] : memref<128x1xf32, #tpu.memory_space<vmem>>, vector<128x1xf32>
      %15 = tpu.reciprocal %13 : vector<128x1xf32> -> vector<128x1xf32>
      %16 = arith.mulf %14, %15 : vector<128x1xf32>
      %c0_7 = arith.constant 0 : index
      %c0_8 = arith.constant 0 : index
      %17 = vector.load %arg7[%c0_7, %c0_8] : memref<128x1xf32, #tpu.memory_space<vmem>>, vector<128x1xf32>
      tpu.vector_store %arg7[%c0_7, %c0_8], %16 {strides = array<i32>} : memref<128x1xf32, #tpu.memory_space<vmem>>, vector<128x1xf32>,
    } else {
    }
    return
  }
  func.func @transform_0(%arg0: i32, %arg1: i32, %arg2: memref<4xi32, #tpu.memory_space<smem>>, %arg3: memref<4xi32, #tpu.memory_space<smem>>) -> (i32, i32) {
    %c0_i32 = arith.constant 0 : i32
    %c0_i32_0 = arith.constant 0 : i32
    return %arg0, %c0_i32 : i32, i32
  }
  func.func @transform_1(%arg0: i32, %arg1: i32, %arg2: memref<4xi32, #tpu.memory_space<smem>>, %arg3: memref<4xi32, #tpu.memory_space<smem>>) -> (i32, i32) {
    %c1_i32 = arith.constant 1 : i32
    %0 = arith.muli %arg0, %c1_i32 : i32
    %1 = arith.addi %0, %arg1 : i32
    %2 = arith.index_cast %1 : i32 to index
    %3 = memref.load %arg2[%2] : memref<4xi32, #tpu.memory_space<smem>>
    %c0_i32 = arith.constant 0 : i32
    %c0_i32_0 = arith.constant 0 : i32
    return %c0_i32, %3 : i32, i32
  }
  func.func @transform_2(%arg0: i32, %arg1: i32, %arg2: memref<4xi32, #tpu.memory_space<smem>>, %arg3: memref<4xi32, #tpu.memory_space<smem>>) -> (i32, i32) {
    %c0_i32 = arith.constant 0 : i32
    %c0_i32_0 = arith.constant 0 : i32
    return %arg0, %c0_i32 : i32, i32
  }
  func.func @transform_3(%arg0: i32, %arg1: i32, %arg2: memref<4xi32, #tpu.memory_space<smem>>, %arg3: memref<4xi32, #tpu.memory_space<smem>>) -> (i32, i32) {
    %c0_i32 = arith.constant 0 : i32
    %c0_i32_0 = arith.constant 0 : i32
    return %arg0, %c0_i32 : i32, i32
  }
}

</mosaic_0001>

<llo_original>
// kernel: tpu_custom_call.1
$region0: #{tpu_custom_call.1}
  #allocation0 [shape = 'u32[]', space=smem, size = 0x4, offset = 0x4, fixed_abs, tag = 'smem constant byte address 0x4 - core index']
  #allocation1 [shape = 'u32[72,128]{1,0:T(1,128)}', space=vmem, size = 0x9000, scoped, tag = 'internal scratch']
  #allocation2 [shape = 'f32[128,128]{1,0:T(8,128)}', space=vmem, size = 0x10000, scoped, tag = 'scratch operand']
  #allocation3 [shape = 's32[1]{0}', space=sflag, size = 0x4, scoped, tag = 'scoped memory for tpu_custom_call.1']
  #allocation4 [shape = 'u8[512]{0}', space=smem, size = 0x200, scoped, tag = 'prefetched SMEM operand 0']
  #allocation5 [shape = 'u8[512]{0}', space=smem, size = 0x200, scoped, tag = 'prefetched SMEM operand 1']
  %s0 = inlined_call_operand.vmem [shape: s32[4], index: 0, kind: input, shape index: {}]
  %s1 = inlined_call_operand.vmem [shape: s32[4], index: 1, kind: input, shape index: {}]
  %s2 = inlined_call_operand.vmem [shape: f32[512,3], index: 2, kind: input, shape index: {}]
  %s3 = inlined_call_operand.vmem [shape: f32[3,512], index: 3, kind: input, shape index: {}]
  %s4 = inlined_call_operand.vmem [shape: f32[512,1], index: 4, kind: input, shape index: {}]
  %s5 = inlined_call_operand.vmem [shape: f32[512,1], index: 5, kind: output, shape index: {}]
  %s6 = sld [smem:[#allocation0]]
  $region57: #{tpu_custom_call.1} parent=0
    _
  %s8 = ssub.s32 1, %s6
  %s9 = scalar_select 0, %s8, %s6
  %s11 = sshll.u32 %s0, 4
  %s12 = int_to_ptr.vmem [resolvable:$true] %s11
  %14 = dma.vmem_to_smem %s12, 16, [#allocation4], [#allocation3]
  %s16 = sshll.u32 %s1, 4
  %s17 = int_to_ptr.vmem [resolvable:$true] %s16
  %19 = dma.vmem_to_smem %s17, 16, [#allocation5], [#allocation3]
  %21 = dma.done [#allocation3], 32
  %22 = sfence
  loop: start=0, step=1, limit=6
  $region2: #{tpu_custom_call.1} parent=0 // loop_pre_header
    _
  $region3: #{tpu_custom_call.1} parent=0 // loop_header
    %s24 = sphi 0, %s28
    %p25 = scmp.ge.s32.totalorder %s24, 6
    %s31 = sphi 0, %s43
    %s32 = sphi 0, %s39
    %s33 = sphi 0, %s31
    %s34 = sphi 0, %s32
    %s35 = sphi 0, %s33
    %s36 = sphi 0, %s34
    %s46 = sphi 0, %s48
    %s49 = sphi 0, %s46
    %s50 = sphi 0, %s49
    %s66 = sphi 0, %s50
    %s76 = sphi 0, %s78
    %s79 = sphi 0, %s76
    %s80 = sphi 0, %s79
    %s96 = sphi 0, %s80
    %s102 = sphi 0, %s104
    %s105 = sphi 0, %s102
    %s106 = sphi 0, %s105
    %s122 = sphi 0, %s106
    %s128 = sphi 0, %s130
    %s131 = sphi 0, %s128
    %s132 = sphi 0, %s131
    %s148 = sphi 0, %s132
  $region4: #{tpu_custom_call.1} parent=0 // loop_header_branch
    %27 = sbr.rel (%p25) target = $region8
  $region5: #{tpu_custom_call.1} parent=0 // loop_body
    %s29 = ssub.s32 %s24, 1
    %s30 = ssub.s32 %s24, 2
    %s37 = sadd.s32 1, %s32
    %p38 = scmp.ge.s32.totalorder %s37, 1
    %s39 = scalar_select %p38, 0, %s37
    %s40 = sadd.s32 1, %s31
    %s41 = scalar_select %p38, %s40, %s31
    %p42 = scmp.ge.s32.totalorder %s41, 4
    %s43 = scalar_select %p42, 0, %s41
    %s44 = ssub.s32 %s31, %s43
    %p45 = scmp.eq.s32.totalorder %s44, 0
    %s47 = sadd.s32 %s46, 1
    %s48 = scalar_select %p45, %s46, %s47
    %p51 = pneg %p45
    %p52 = scmp.eq.s32.totalorder %s24, 3
    %p53 = por %p51, %p52
    %p54 = scmp.ne.s32.totalorder %s46, %s49
    %p55 = scmp.eq.s32.totalorder %s24, 0
    %p56 = por %p54, %p55
    %p57 = scmp.ne.s32.totalorder %s46, %s49
    %p58 = scmp.eq.s32.totalorder %s29, 3
    %p59 = por %p57, %p58
    %p60 = scmp.ne.s32.totalorder %s49, %s50
    %p61 = scmp.eq.s32.totalorder %s29, 0
    %p62 = por %p60, %p61
    %p63 = scmp.ne.s32.totalorder %s49, %s50
    %p64 = scmp.eq.s32.totalorder %s30, 3
    %p65 = por %p63, %p64
    %p67 = scmp.ne.s32.totalorder %s50, %s66
    %p68 = scmp.eq.s32.totalorder %s30, 0
    %p69 = por %p67, %p68
    %s70 = sadd.s32 %s31, %s32
    %s71 = sld [smem:[#allocation4 + %s70]]
    %s72 = sadd.s32 %s43, %s39
    %s73 = sld [smem:[#allocation4 + %s72]]
    %s74 = ssub.s32 %s71, %s73
    %p75 = scmp.eq.s32.totalorder %s74, 0
    %s77 = sadd.s32 %s76, 1
    %s78 = scalar_select %p75, %s76, %s77
    %p81 = pneg %p75
    %p82 = scmp.eq.s32.totalorder %s24, 3
    %p83 = por %p81, %p82
    %p84 = scmp.ne.s32.totalorder %s76, %s79
    %p85 = scmp.eq.s32.totalorder %s24, 0
    %p86 = por %p84, %p85
    %p87 = scmp.ne.s32.totalorder %s76, %s79
    %p88 = scmp.eq.s32.totalorder %s29, 3
    %p89 = por %p87, %p88
    %p90 = scmp.ne.s32.totalorder %s79, %s80
    %p91 = scmp.eq.s32.totalorder %s29, 0
    %p92 = por %p90, %p91
    %p93 = scmp.ne.s32.totalorder %s79, %s80
    %p94 = scmp.eq.s32.totalorder %s30, 3
    %p95 = por %p93, %p94
    %p97 = scmp.ne.s32.totalorder %s80, %s96
    %p98 = scmp.eq.s32.totalorder %s30, 0
    %p99 = por %p97, %p98
    %s100 = ssub.s32 %s31, %s43
    %p101 = scmp.eq.s32.totalorder %s100, 0
    %s103 = sadd.s32 %s102, 1
    %s104 = scalar_select %p101, %s102, %s103
    %p107 = pneg %p101
    %p108 = scmp.eq.s32.totalorder %s24, 3
    %p109 = por %p107, %p108
    %p110 = scmp.ne.s32.totalorder %s102, %s105
    %p111 = scmp.eq.s32.totalorder %s24, 0
    %p112 = por %p110, %p111
    %p113 = scmp.ne.s32.totalorder %s102, %s105
    %p114 = scmp.eq.s32.totalorder %s29, 3
    %p115 = por %p113, %p114
    %p116 = scmp.ne.s32.totalorder %s105, %s106
    %p117 = scmp.eq.s32.totalorder %s29, 0
    %p118 = por %p116, %p117
    %p119 = scmp.ne.s32.totalorder %s105, %s106
    %p120 = scmp.eq.s32.totalorder %s30, 3
    %p121 = por %p119, %p120
    %p123 = scmp.ne.s32.totalorder %s106, %s122
    %p124 = scmp.eq.s32.totalorder %s30, 0
    %p125 = por %p123, %p124
    %s126 = ssub.s32 %s31, %s43
    %p127 = scmp.eq.s32.totalorder %s126, 0
    %s129 = sadd.s32 %s128, 1
    %s130 = scalar_select %p127, %s128, %s129
    %p133 = pneg %p127
    %p134 = scmp.eq.s32.totalorder %s24, 3
    %p135 = por %p133, %p134
    %p136 = scmp.ne.s32.totalorder %s128, %s131
    %p137 = scmp.eq.s32.totalorder %s24, 0
    %p138 = por %p136, %p137
    %p139 = scmp.ne.s32.totalorder %s128, %s131
    %p140 = scmp.eq.s32.totalorder %s29, 3
    %p141 = por %p139, %p140
    %p142 = scmp.ne.s32.totalorder %s131, %s132
    %p143 = scmp.eq.s32.totalorder %s29, 0
    %p144 = por %p142, %p143
    %p145 = scmp.ne.s32.totalorder %s131, %s132
    %p146 = scmp.eq.s32.totalorder %s30, 3
    %p147 = por %p145, %p146
    %p149 = scmp.ne.s32.totalorder %s132, %s148
    %p150 = scmp.eq.s32.totalorder %s30, 0
    %p151 = por %p149, %p150
    %p152 = scmp.le.s32.totalorder 1, %s24
    %p153 = scmp.lt.s32.totalorder %s24, 5
    %p154 = pnand %p152, %p153
    %p155 = pneg %p154
    // Predicated region
    $region9: #{tpu_custom_call.1} parent=5 // pred_check
      _
    $region10: #{tpu_custom_call.1} parent=5 // pred_check_branch
      %157 = sbr.rel (%p154) target = $region12
    $region11: #{tpu_custom_call.1} parent=5 // pred_region
      %s158 = ssub.s32 %s24, 1
    $region12: #{tpu_custom_call.1} parent=5 // pred_fallthru
      _
    %p159 = scmp.lt.s32.totalorder %s24, 4
    // Predicated region
    $region13: #{tpu_custom_call.1} parent=5 // pred_check
      %p160 = pneg %p159
    $region14: #{tpu_custom_call.1} parent=5 // pred_check_branch
      %162 = sbr.rel (%p160) target = $region16
    $region15: #{tpu_custom_call.1} parent=5 // pred_region
      // Predicated region
      $region17: #{tpu_custom_call.1} parent=15 // pred_check
        %p163 = pneg %p56
      $region18: #{tpu_custom_call.1} parent=15 // pred_check_branch
        %165 = sbr.rel (%p163) target = $region20
      $region19: #{tpu_custom_call.1} parent=15 // pred_region
        %s166 = smul.u32 16, %s31
        %p167 = scmp.lt.s32.totalorder %s166, 63
        %s168 = scalar_select %p167, %s166, 63
        %s169 = smul.addr %s168, 8
        %s170 = scalar_lea.vmem %s2, %s169
        %s171 = smul.u32 16, %s31
      $region20: #{tpu_custom_call.1} parent=15 // pred_fallthru
        _
      // Predicated region
      $region21: #{tpu_custom_call.1} parent=15 // pred_check
        %p172 = pneg %p86
      $region22: #{tpu_custom_call.1} parent=15 // pred_check_branch
        %174 = sbr.rel (%p172) target = $region24
      $region23: #{tpu_custom_call.1} parent=15 // pred_region
        %s175 = sadd.s32 %s31, %s32
        %s176 = sld [smem:[#allocation4 + %s175]]
        %s177 = smul.u32 2, %s176
        %p178 = scmp.lt.s32.totalorder %s177, 3
        %s179 = scalar_select %p178, %s177, 3
        %s180 = smul.addr %s179, 4
        %s181 = scalar_lea.vmem %s3, %s180
        %s182 = sadd.s32 %s31, %s32
        %s183 = sld [smem:[#allocation4 + %s182]]
        %s184 = smul.u32 2, %s183
      $region24: #{tpu_custom_call.1} parent=15 // pred_fallthru
        _
      // Predicated region
      $region25: #{tpu_custom_call.1} parent=15 // pred_check
        %p185 = pneg %p112
      $region26: #{tpu_custom_call.1} parent=15 // pred_check_branch
        %187 = sbr.rel (%p185) target = $region28
      $region27: #{tpu_custom_call.1} parent=15 // pred_region
        %s188 = smul.u32 16, %s31
        %p189 = scmp.lt.s32.totalorder %s188, 63
        %s190 = scalar_select %p189, %s188, 63
        %s191 = smul.addr %s190, 8
        %s192 = scalar_lea.vmem %s4, %s191
        %s193 = smul.u32 16, %s31
      $region28: #{tpu_custom_call.1} parent=15 // pred_fallthru
        _
    $region16: #{tpu_custom_call.1} parent=5 // pred_fallthru
      _
    %p194 = scmp.le.s32.totalorder 1, %s24
    %p195 = scmp.lt.s32.totalorder %s24, 5
    %p196 = pnand %p194, %p195
    %p197 = pneg %p196
    // Predicated region
    $region29: #{tpu_custom_call.1} parent=5 // pred_check
      _
    $region30: #{tpu_custom_call.1} parent=5 // pred_check_branch
      %199 = sbr.rel (%p196) target = $region32
    $region31: #{tpu_custom_call.1} parent=5 // pred_region
      %s200 = ssub.s32 %s24, 1
      %s201 = smul.u32 16, %s33
      %p202 = scmp.lt.s32.totalorder %s201, 63
      %s203 = scalar_select %p202, %s201, 63
      %s204 = smul.addr %s203, 8
      %s205 = scalar_lea.vmem %s2, %s204
      %p206 = pneg %p62
      %p207 = pneg %p59
      %s208 = sadd.s32 %s33, %s34
      %s209 = sld [smem:[#allocation4 + %s208]]
      %s210 = smul.u32 2, %s209
      %p211 = scmp.lt.s32.totalorder %s210, 3
      %s212 = scalar_select %p211, %s210, 3
      %s213 = smul.addr %s212, 4
      %s214 = scalar_lea.vmem %s3, %s213
      %p215 = pneg %p92
      %p216 = pneg %p89
      %s217 = smul.u32 16, %s33
      %p218 = scmp.lt.s32.totalorder %s217, 63
      %s219 = scalar_select %p218, %s217, 63
      %s220 = smul.addr %s219, 8
      %s221 = scalar_lea.vmem %s4, %s220
      %p222 = pneg %p118
      %p223 = pneg %p115
      %p224 = pneg %p144
      %p225 = pneg %p141
      %s226 = smul.u32 16, %s33
      %p227 = scmp.lt.s32.totalorder %s226, 63
      %s228 = scalar_select %p227, %s226, 63
      %s229 = smul.addr %s228, 8
      %s230 = scalar_lea.vmem %s5, %s229
      %s231 = smul.u32 16, %s33
      %p232 = scmp.lt.s32.totalorder %s231, 63
      %s233 = scalar_select %p232, %s231, 63
      %s234 = smul.addr %s233, 8
      %s235 = scalar_lea.vmem %s2, %s234
      %s236 = smul.u32 16, %s33
      %s237 = sadd.s32 %s33, %s34
      %s238 = sld [smem:[#allocation4 + %s237]]
      %s239 = smul.u32 2, %s238
      %p240 = scmp.lt.s32.totalorder %s239, 3
      %s241 = scalar_select %p240, %s239, 3
      %s242 = smul.addr %s241, 4
      %s243 = scalar_lea.vmem %s3, %s242
      %s244 = sadd.s32 %s33, %s34
      %s245 = sld [smem:[#allocation4 + %s244]]
      %s246 = smul.u32 2, %s245
      %s247 = smul.u32 16, %s33
      %p248 = scmp.lt.s32.totalorder %s247, 63
      %s249 = scalar_select %p248, %s247, 63
      %s250 = smul.addr %s249, 8
      %s251 = scalar_lea.vmem %s4, %s250
      %s252 = smul.u32 16, %s33
      %s253 = smul.u32 16, %s33
      %p254 = scmp.lt.s32.totalorder %s253, 63
      %s255 = scalar_select %p254, %s253, 63
      %s256 = smul.addr %s255, 8
      %s257 = scalar_lea.vmem %s5, %s256
      %s258 = smul.u32 16, %s33
      %p259 = scmp.eq.s32.totalorder %s34, 0
      // Predicated region
      $region33: #{tpu_custom_call.1} parent=31 // pred_check
        %p260 = pneg %p259
      $region34: #{tpu_custom_call.1} parent=31 // pred_check_branch
        %262 = sbr.rel (%p260) target = $region36
      $region35: #{tpu_custom_call.1} parent=31 // pred_region
        %263 = vst [vmem:[#allocation2] sm:$0xff] 0.0
        %264 = vst [vmem:[#allocation2 + $0x8] sm:$0xff] 0.0
        %265 = vst [vmem:[#allocation2 + $0x10] sm:$0xff] 0.0
        %266 = vst [vmem:[#allocation2 + $0x18] sm:$0xff] 0.0
        %267 = vst [vmem:[#allocation2 + $0x20] sm:$0xff] 0.0
        %268 = vst [vmem:[#allocation2 + $0x28] sm:$0xff] 0.0
        %269 = vst [vmem:[#allocation2 + $0x30] sm:$0xff] 0.0
        %270 = vst [vmem:[#allocation2 + $0x38] sm:$0xff] 0.0
        %271 = vst [vmem:[#allocation2 + $0x40] sm:$0xff] 0.0
        %272 = vst [vmem:[#allocation2 + $0x48] sm:$0xff] 0.0
        %273 = vst [vmem:[#allocation2 + $0x50] sm:$0xff] 0.0
        %274 = vst [vmem:[#allocation2 + $0x58] sm:$0xff] 0.0
        %275 = vst [vmem:[#allocation2 + $0x60] sm:$0xff] 0.0
        %276 = vst [vmem:[#allocation2 + $0x68] sm:$0xff] 0.0
        %277 = vst [vmem:[#allocation2 + $0x70] sm:$0xff] 0.0
        %278 = vst [vmem:[#allocation2 + $0x78] sm:$0xff] 0.0
      $region36: #{tpu_custom_call.1} parent=31 // pred_fallthru
        _
      %s279 = sld [smem:[#allocation5 + %s33]]
      %p280 = scmp.lt.s32.totalorder %s34, %s279
      // Predicated region
      $region37: #{tpu_custom_call.1} parent=31 // pred_check
        %p281 = pneg %p280
      $region38: #{tpu_custom_call.1} parent=31 // pred_check_branch
        %283 = sbr.rel (%p281) target = $region40
      $region39: #{tpu_custom_call.1} parent=31 // pred_region
        %v284 = vld [vmem:[%s235] sm:$0xff]
        %v285 = vld [vmem:[%s235 + $0x8] sm:$0xff]
        %v286 = vld [vmem:[%s235 + $0x10] sm:$0xff]
        %v287 = vld [vmem:[%s235 + $0x18] sm:$0xff]
        %v288 = vld [vmem:[%s235 + $0x20] sm:$0xff]
        %v289 = vld [vmem:[%s235 + $0x28] sm:$0xff]
        %v290 = vld [vmem:[%s235 + $0x30] sm:$0xff]
        %v291 = vld [vmem:[%s235 + $0x38] sm:$0xff]
        %v292 = vld [vmem:[%s235 + $0x40] sm:$0xff]
        %v293 = vld [vmem:[%s235 + $0x48] sm:$0xff]
        %v294 = vld [vmem:[%s235 + $0x50] sm:$0xff]
        %v295 = vld [vmem:[%s235 + $0x58] sm:$0xff]
        %v296 = vld [vmem:[%s235 + $0x60] sm:$0xff]
        %v297 = vld [vmem:[%s235 + $0x68] sm:$0xff]
        %v298 = vld [vmem:[%s235 + $0x70] sm:$0xff]
        %v299 = vld [vmem:[%s235 + $0x78] sm:$0xff]
        %v300 = vld [vmem:[%s243] sm:$0x77]
        %302 = vset.pattern.permute.xlu0 0
        %303 = vperm.xlu0 %302, %v284
        %v304 = vpop.permute.xlu0 %303
        %307 = vset.pattern.permute.xlu0 0
        %308 = vperm.xlu0 %307, %v285
        %v309 = vpop.permute.xlu0 %308
        %312 = vset.pattern.permute.xlu0 0
        %313 = vperm.xlu0 %312, %v286
        %v314 = vpop.permute.xlu0 %313
        %317 = vset.pattern.permute.xlu0 0
        %318 = vperm.xlu0 %317, %v287
        %v319 = vpop.permute.xlu0 %318
        %322 = vset.pattern.permute.xlu0 0
        %323 = vperm.xlu0 %322, %v288
        %v324 = vpop.permute.xlu0 %323
        %327 = vset.pattern.permute.xlu0 0
        %328 = vperm.xlu0 %327, %v289
        %v329 = vpop.permute.xlu0 %328
        %332 = vset.pattern.permute.xlu0 0
        %333 = vperm.xlu0 %332, %v290
        %v334 = vpop.permute.xlu0 %333
        %337 = vset.pattern.permute.xlu0 0
        %338 = vperm.xlu0 %337, %v291
        %v339 = vpop.permute.xlu0 %338
        %342 = vset.pattern.permute.xlu0 0
        %343 = vperm.xlu0 %342, %v292
        %v344 = vpop.permute.xlu0 %343
        %347 = vset.pattern.permute.xlu0 0
        %348 = vperm.xlu0 %347, %v293
        %v349 = vpop.permute.xlu0 %348
        %352 = vset.pattern.permute.xlu0 0
        %353 = vperm.xlu0 %352, %v294
        %v354 = vpop.permute.xlu0 %353
        %357 = vset.pattern.permute.xlu0 0
        %358 = vperm.xlu0 %357, %v295
        %v359 = vpop.permute.xlu0 %358
        %362 = vset.pattern.permute.xlu0 0
        %363 = vperm.xlu0 %362, %v296
        %v364 = vpop.permute.xlu0 %363
        %367 = vset.pattern.permute.xlu0 0
        %368 = vperm.xlu0 %367, %v297
        %v369 = vpop.permute.xlu0 %368
        %372 = vset.pattern.permute.xlu0 0
        %373 = vperm.xlu0 %372, %v298
        %v374 = vpop.permute.xlu0 %373
        %377 = vset.pattern.permute.xlu0 0
        %378 = vperm.xlu0 %377, %v299
        %v379 = vpop.permute.xlu0 %378
        %v382 = vperm.slane %v300, 0
        %v383 = vperm.slane %v300, 4
        %v386 = vperm.slane %v382, 0
        %v387 = vperm.slane %v383, 0
        %v388 = vsub.f32 %v304, %v386
        %v389 = vsub.f32 %v304, %v387
        %v390 = vsub.f32 %v309, %v386
        %v391 = vsub.f32 %v309, %v387
        %v392 = vsub.f32 %v314, %v386
        %v393 = vsub.f32 %v314, %v387
        %v394 = vsub.f32 %v319, %v386
        %v395 = vsub.f32 %v319, %v387
        %v396 = vsub.f32 %v324, %v386
        %v397 = vsub.f32 %v324, %v387
        %v398 = vsub.f32 %v329, %v386
        %v399 = vsub.f32 %v329, %v387
        %v400 = vsub.f32 %v334, %v386
        %v401 = vsub.f32 %v334, %v387
        %v402 = vsub.f32 %v339, %v386
        %v403 = vsub.f32 %v339, %v387
        %v404 = vsub.f32 %v344, %v386
        %v405 = vsub.f32 %v344, %v387
        %v406 = vsub.f32 %v349, %v386
        %v407 = vsub.f32 %v349, %v387
        %v408 = vsub.f32 %v354, %v386
        %v409 = vsub.f32 %v354, %v387
        %v410 = vsub.f32 %v359, %v386
        %v411 = vsub.f32 %v359, %v387
        %v412 = vsub.f32 %v364, %v386
        %v413 = vsub.f32 %v364, %v387
        %v414 = vsub.f32 %v369, %v386
        %v415 = vsub.f32 %v369, %v387
        %v416 = vsub.f32 %v374, %v386
        %v417 = vsub.f32 %v374, %v387
        %v418 = vsub.f32 %v379, %v386
        %v419 = vsub.f32 %v379, %v387
        %v420 = vmul.f32 %v388, %v388
        %v421 = vmul.f32 %v389, %v389
        %v422 = vmul.f32 %v390, %v390
        %v423 = vmul.f32 %v391, %v391
        %v424 = vmul.f32 %v392, %v392
        %v425 = vmul.f32 %v393, %v393
        %v426 = vmul.f32 %v394, %v394
        %v427 = vmul.f32 %v395, %v395
        %v428 = vmul.f32 %v396, %v396
        %v429 = vmul.f32 %v397, %v397
        %v430 = vmul.f32 %v398, %v398
        %v431 = vmul.f32 %v399, %v399
        %v432 = vmul.f32 %v400, %v400
        %v433 = vmul.f32 %v401, %v401
        %v434 = vmul.f32 %v402, %v402
        %v435 = vmul.f32 %v403, %v403
        %v436 = vmul.f32 %v404, %v404
        %v437 = vmul.f32 %v405, %v405
        %v438 = vmul.f32 %v406, %v406
        %v439 = vmul.f32 %v407, %v407
        %v440 = vmul.f32 %v408, %v408
        %v441 = vmul.f32 %v409, %v409
        %v442 = vmul.f32 %v410, %v410
        %v443 = vmul.f32 %v411, %v411
        %v444 = vmul.f32 %v412, %v412
        %v445 = vmul.f32 %v413, %v413
        %v446 = vmul.f32 %v414, %v414
        %v447 = vmul.f32 %v415, %v415
        %v448 = vmul.f32 %v416, %v416
        %v449 = vmul.f32 %v417, %v417
        %v450 = vmul.f32 %v418, %v418
        %v451 = vmul.f32 %v419, %v419
        %452 = vset.pattern.permute.xlu0 1
        %453 = vperm.xlu0 %452, %v284
        %v454 = vpop.permute.xlu0 %453
        %456 = vset.pattern.permute.xlu0 1
        %457 = vperm.xlu0 %456, %v285
        %v458 = vpop.permute.xlu0 %457
        %460 = vset.pattern.permute.xlu0 1
        %461 = vperm.xlu0 %460, %v286
        %v462 = vpop.permute.xlu0 %461
        %464 = vset.pattern.permute.xlu0 1
        %465 = vperm.xlu0 %464, %v287
        %v466 = vpop.permute.xlu0 %465
        %468 = vset.pattern.permute.xlu0 1
        %469 = vperm.xlu0 %468, %v288
        %v470 = vpop.permute.xlu0 %469
        %472 = vset.pattern.permute.xlu0 1
        %473 = vperm.xlu0 %472, %v289
        %v474 = vpop.permute.xlu0 %473
        %476 = vset.pattern.permute.xlu0 1
        %477 = vperm.xlu0 %476, %v290
        %v478 = vpop.permute.xlu0 %477
        %480 = vset.pattern.permute.xlu0 1
        %481 = vperm.xlu0 %480, %v291
        %v482 = vpop.permute.xlu0 %481
        %484 = vset.pattern.permute.xlu0 1
        %485 = vperm.xlu0 %484, %v292
        %v486 = vpop.permute.xlu0 %485
        %488 = vset.pattern.permute.xlu0 1
        %489 = vperm.xlu0 %488, %v293
        %v490 = vpop.permute.xlu0 %489
        %492 = vset.pattern.permute.xlu0 1
        %493 = vperm.xlu0 %492, %v294
        %v494 = vpop.permute.xlu0 %493
        %496 = vset.pattern.permute.xlu0 1
        %497 = vperm.xlu0 %496, %v295
        %v498 = vpop.permute.xlu0 %497
        %500 = vset.pattern.permute.xlu0 1
        %501 = vperm.xlu0 %500, %v296
        %v502 = vpop.permute.xlu0 %501
        %504 = vset.pattern.permute.xlu0 1
        %505 = vperm.xlu0 %504, %v297
        %v506 = vpop.permute.xlu0 %505
        %508 = vset.pattern.permute.xlu0 1
        %509 = vperm.xlu0 %508, %v298
        %v510 = vpop.permute.xlu0 %509
        %512 = vset.pattern.permute.xlu0 1
        %513 = vperm.xlu0 %512, %v299
        %v514 = vpop.permute.xlu0 %513
        %v516 = vperm.slane %v300, 1
        %v517 = vperm.slane %v300, 5
        %v520 = vperm.slane %v516, 1
        %v521 = vperm.slane %v517, 1
        %v522 = vsub.f32 %v454, %v520
        %v523 = vsub.f32 %v454, %v521
        %v524 = vsub.f32 %v458, %v520
        %v525 = vsub.f32 %v458, %v521
        %v526 = vsub.f32 %v462, %v520
        %v527 = vsub.f32 %v462, %v521
        %v528 = vsub.f32 %v466, %v520
        %v529 = vsub.f32 %v466, %v521
        %v530 = vsub.f32 %v470, %v520
        %v531 = vsub.f32 %v470, %v521
        %v532 = vsub.f32 %v474, %v520
        %v533 = vsub.f32 %v474, %v521
        %v534 = vsub.f32 %v478, %v520
        %v535 = vsub.f32 %v478, %v521
        %v536 = vsub.f32 %v482, %v520
        %v537 = vsub.f32 %v482, %v521
        %v538 = vsub.f32 %v486, %v520
        %v539 = vsub.f32 %v486, %v521
        %v540 = vsub.f32 %v490, %v520
        %v541 = vsub.f32 %v490, %v521
        %v542 = vsub.f32 %v494, %v520
        %v543 = vsub.f32 %v494, %v521
        %v544 = vsub.f32 %v498, %v520
        %v545 = vsub.f32 %v498, %v521
        %v546 = vsub.f32 %v502, %v520
        %v547 = vsub.f32 %v502, %v521
        %v548 = vsub.f32 %v506, %v520
        %v549 = vsub.f32 %v506, %v521
        %v550 = vsub.f32 %v510, %v520
        %v551 = vsub.f32 %v510, %v521
        %v552 = vsub.f32 %v514, %v520
        %v553 = vsub.f32 %v514, %v521
        %v554 = vmul.f32 %v522, %v522
        %v555 = vmul.f32 %v523, %v523
        %v556 = vmul.f32 %v524, %v524
        %v557 = vmul.f32 %v525, %v525
        %v558 = vmul.f32 %v526, %v526
        %v559 = vmul.f32 %v527, %v527
        %v560 = vmul.f32 %v528, %v528
        %v561 = vmul.f32 %v529, %v529
        %v562 = vmul.f32 %v530, %v530
        %v563 = vmul.f32 %v531, %v531
        %v564 = vmul.f32 %v532, %v532
        %v565 = vmul.f32 %v533, %v533
        %v566 = vmul.f32 %v534, %v534
        %v567 = vmul.f32 %v535, %v535
        %v568 = vmul.f32 %v536, %v536
        %v569 = vmul.f32 %v537, %v537
        %v570 = vmul.f32 %v538, %v538
        %v571 = vmul.f32 %v539, %v539
        %v572 = vmul.f32 %v540, %v540
        %v573 = vmul.f32 %v541, %v541
        %v574 = vmul.f32 %v542, %v542
        %v575 = vmul.f32 %v543, %v543
        %v576 = vmul.f32 %v544, %v544
        %v577 = vmul.f32 %v545, %v545
        %v578 = vmul.f32 %v546, %v546
        %v579 = vmul.f32 %v547, %v547
        %v580 = vmul.f32 %v548, %v548
        %v581 = vmul.f32 %v549, %v549
        %v582 = vmul.f32 %v550, %v550
        %v583 = vmul.f32 %v551, %v551
        %v584 = vmul.f32 %v552, %v552
        %v585 = vmul.f32 %v553, %v553
        %v586 = vadd.f32 %v420, %v554
        %v587 = vadd.f32 %v421, %v555
        %v588 = vadd.f32 %v422, %v556
        %v589 = vadd.f32 %v423, %v557
        %v590 = vadd.f32 %v424, %v558
        %v591 = vadd.f32 %v425, %v559
        %v592 = vadd.f32 %v426, %v560
        %v593 = vadd.f32 %v427, %v561
        %v594 = vadd.f32 %v428, %v562
        %v595 = vadd.f32 %v429, %v563
        %v596 = vadd.f32 %v430, %v564
        %v597 = vadd.f32 %v431, %v565
        %v598 = vadd.f32 %v432, %v566
        %v599 = vadd.f32 %v433, %v567
        %v600 = vadd.f32 %v434, %v568
        %v601 = vadd.f32 %v435, %v569
        %v602 = vadd.f32 %v436, %v570
        %v603 = vadd.f32 %v437, %v571
        %v604 = vadd.f32 %v438, %v572
        %v605 = vadd.f32 %v439, %v573
        %v606 = vadd.f32 %v440, %v574
        %v607 = vadd.f32 %v441, %v575
        %v608 = vadd.f32 %v442, %v576
        %v609 = vadd.f32 %v443, %v577
        %v610 = vadd.f32 %v444, %v578
        %v611 = vadd.f32 %v445, %v579
        %v612 = vadd.f32 %v446, %v580
        %v613 = vadd.f32 %v447, %v581
        %v614 = vadd.f32 %v448, %v582
        %v615 = vadd.f32 %v449, %v583
        %v616 = vadd.f32 %v450, %v584
        %v617 = vadd.f32 %v451, %v585
        %618 = vset.pattern.permute.xlu0 2
        %619 = vperm.xlu0 %618, %v284
        %v620 = vpop.permute.xlu0 %619
        %622 = vset.pattern.permute.xlu0 2
        %623 = vperm.xlu0 %622, %v285
        %v624 = vpop.permute.xlu0 %623
        %626 = vset.pattern.permute.xlu0 2
        %627 = vperm.xlu0 %626, %v286
        %v628 = vpop.permute.xlu0 %627
        %630 = vset.pattern.permute.xlu0 2
        %631 = vperm.xlu0 %630, %v287
        %v632 = vpop.permute.xlu0 %631
        %634 = vset.pattern.permute.xlu0 2
        %635 = vperm.xlu0 %634, %v288
        %v636 = vpop.permute.xlu0 %635
        %638 = vset.pattern.permute.xlu0 2
        %639 = vperm.xlu0 %638, %v289
        %v640 = vpop.permute.xlu0 %639
        %642 = vset.pattern.permute.xlu0 2
        %643 = vperm.xlu0 %642, %v290
        %v644 = vpop.permute.xlu0 %643
        %646 = vset.pattern.permute.xlu0 2
        %647 = vperm.xlu0 %646, %v291
        %v648 = vpop.permute.xlu0 %647
        %650 = vset.pattern.permute.xlu0 2
        %651 = vperm.xlu0 %650, %v292
        %v652 = vpop.permute.xlu0 %651
        %654 = vset.pattern.permute.xlu0 2
        %655 = vperm.xlu0 %654, %v293
        %v656 = vpop.permute.xlu0 %655
        %658 = vset.pattern.permute.xlu0 2
        %659 = vperm.xlu0 %658, %v294
        %v660 = vpop.permute.xlu0 %659
        %662 = vset.pattern.permute.xlu0 2
        %663 = vperm.xlu0 %662, %v295
        %v664 = vpop.permute.xlu0 %663
        %666 = vset.pattern.permute.xlu0 2
        %667 = vperm.xlu0 %666, %v296
        %v668 = vpop.permute.xlu0 %667
        %670 = vset.pattern.permute.xlu0 2
        %671 = vperm.xlu0 %670, %v297
        %v672 = vpop.permute.xlu0 %671
        %674 = vset.pattern.permute.xlu0 2
        %675 = vperm.xlu0 %674, %v298
        %v676 = vpop.permute.xlu0 %675
        %678 = vset.pattern.permute.xlu0 2
        %679 = vperm.xlu0 %678, %v299
        %v680 = vpop.permute.xlu0 %679
        %v682 = vperm.slane %v300, 2
        %v683 = vperm.slane %v300, 6
        %v686 = vperm.slane %v682, 2
        %v687 = vperm.slane %v683, 2
        %v688 = vsub.f32 %v620, %v686
        %v689 = vsub.f32 %v620, %v687
        %v690 = vsub.f32 %v624, %v686
        %v691 = vsub.f32 %v624, %v687
        %v692 = vsub.f32 %v628, %v686
        %v693 = vsub.f32 %v628, %v687
        %v694 = vsub.f32 %v632, %v686
        %v695 = vsub.f32 %v632, %v687
        %v696 = vsub.f32 %v636, %v686
        %v697 = vsub.f32 %v636, %v687
        %v698 = vsub.f32 %v640, %v686
        %v699 = vsub.f32 %v640, %v687
        %v700 = vsub.f32 %v644, %v686
        %v701 = vsub.f32 %v644, %v687
        %v702 = vsub.f32 %v648, %v686
        %v703 = vsub.f32 %v648, %v687
        %v704 = vsub.f32 %v652, %v686
        %v705 = vsub.f32 %v652, %v687
        %v706 = vsub.f32 %v656, %v686
        %v707 = vsub.f32 %v656, %v687
        %v708 = vsub.f32 %v660, %v686
        %v709 = vsub.f32 %v660, %v687
        %v710 = vsub.f32 %v664, %v686
        %v711 = vsub.f32 %v664, %v687
        %v712 = vsub.f32 %v668, %v686
        %v713 = vsub.f32 %v668, %v687
        %v714 = vsub.f32 %v672, %v686
        %v715 = vsub.f32 %v672, %v687
        %v716 = vsub.f32 %v676, %v686
        %v717 = vsub.f32 %v676, %v687
        %v718 = vsub.f32 %v680, %v686
        %v719 = vsub.f32 %v680, %v687
        %v720 = vmul.f32 %v688, %v688
        %v721 = vmul.f32 %v689, %v689
        %v722 = vmul.f32 %v690, %v690
        %v723 = vmul.f32 %v691, %v691
        %v724 = vmul.f32 %v692, %v692
        %v725 = vmul.f32 %v693, %v693
        %v726 = vmul.f32 %v694, %v694
        %v727 = vmul.f32 %v695, %v695
        %v728 = vmul.f32 %v696, %v696
        %v729 = vmul.f32 %v697, %v697
        %v730 = vmul.f32 %v698, %v698
        %v731 = vmul.f32 %v699, %v699
        %v732 = vmul.f32 %v700, %v700
        %v733 = vmul.f32 %v701, %v701
        %v734 = vmul.f32 %v702, %v702
        %v735 = vmul.f32 %v703, %v703
        %v736 = vmul.f32 %v704, %v704
        %v737 = vmul.f32 %v705, %v705
        %v738 = vmul.f32 %v706, %v706
        %v739 = vmul.f32 %v707, %v707
        %v740 = vmul.f32 %v708, %v708
        %v741 = vmul.f32 %v709, %v709
        %v742 = vmul.f32 %v710, %v710
        %v743 = vmul.f32 %v711, %v711
        %v744 = vmul.f32 %v712, %v712
        %v745 = vmul.f32 %v713, %v713
        %v746 = vmul.f32 %v714, %v714
        %v747 = vmul.f32 %v715, %v715
        %v748 = vmul.f32 %v716, %v716
        %v749 = vmul.f32 %v717, %v717
        %v750 = vmul.f32 %v718, %v718
        %v751 = vmul.f32 %v719, %v719
        %v752 = vadd.f32 %v586, %v720
        %v753 = vadd.f32 %v587, %v721
        %v754 = vadd.f32 %v588, %v722
        %v755 = vadd.f32 %v589, %v723
        %v756 = vadd.f32 %v590, %v724
        %v757 = vadd.f32 %v591, %v725
        %v758 = vadd.f32 %v592, %v726
        %v759 = vadd.f32 %v593, %v727
        %v760 = vadd.f32 %v594, %v728
        %v761 = vadd.f32 %v595, %v729
        %v762 = vadd.f32 %v596, %v730
        %v763 = vadd.f32 %v597, %v731
        %v764 = vadd.f32 %v598, %v732
        %v765 = vadd.f32 %v599, %v733
        %v766 = vadd.f32 %v600, %v734
        %v767 = vadd.f32 %v601, %v735
        %v768 = vadd.f32 %v602, %v736
        %v769 = vadd.f32 %v603, %v737
        %v770 = vadd.f32 %v604, %v738
        %v771 = vadd.f32 %v605, %v739
        %v772 = vadd.f32 %v606, %v740
        %v773 = vadd.f32 %v607, %v741
        %v774 = vadd.f32 %v608, %v742
        %v775 = vadd.f32 %v609, %v743
        %v776 = vadd.f32 %v610, %v744
        %v777 = vadd.f32 %v611, %v745
        %v778 = vadd.f32 %v612, %v746
        %v779 = vadd.f32 %v613, %v747
        %v780 = vadd.f32 %v614, %v748
        %v781 = vadd.f32 %v615, %v749
        %v782 = vadd.f32 %v616, %v750
        %v783 = vadd.f32 %v617, %v751
        %v784 = vmul.f32 %v752, -0.8888889
        %v785 = vmul.f32 %v753, -0.8888889
        %v786 = vmul.f32 %v754, -0.8888889
        %v787 = vmul.f32 %v755, -0.8888889
        %v788 = vmul.f32 %v756, -0.8888889
        %v789 = vmul.f32 %v757, -0.8888889
        %v790 = vmul.f32 %v758, -0.8888889
        %v791 = vmul.f32 %v759, -0.8888889
        %v792 = vmul.f32 %v760, -0.8888889
        %v793 = vmul.f32 %v761, -0.8888889
        %v794 = vmul.f32 %v762, -0.8888889
        %v795 = vmul.f32 %v763, -0.8888889
        %v796 = vmul.f32 %v764, -0.8888889
        %v797 = vmul.f32 %v765, -0.8888889
        %v798 = vmul.f32 %v766, -0.8888889
        %v799 = vmul.f32 %v767, -0.8888889
        %v800 = vmul.f32 %v768, -0.8888889
        %v801 = vmul.f32 %v769, -0.8888889
        %v802 = vmul.f32 %v770, -0.8888889
        %v803 = vmul.f32 %v771, -0.8888889
        %v804 = vmul.f32 %v772, -0.8888889
        %v805 = vmul.f32 %v773, -0.8888889
        %v806 = vmul.f32 %v774, -0.8888889
        %v807 = vmul.f32 %v775, -0.8888889
        %v808 = vmul.f32 %v776, -0.8888889
        %v809 = vmul.f32 %v777, -0.8888889
        %v810 = vmul.f32 %v778, -0.8888889
        %v811 = vmul.f32 %v779, -0.8888889
        %v812 = vmul.f32 %v780, -0.8888889
        %v813 = vmul.f32 %v781, -0.8888889
        %v814 = vmul.f32 %v782, -0.8888889
        %v815 = vmul.f32 %v783, -0.8888889
        %v816 = vmul.f32 %v784, 1.442695
        %v817 = vpow.pop %v816
        %v818 = vmul.f32 %v785, 1.442695
        %v819 = vpow.pop %v818
        %v820 = vmul.f32 %v786, 1.442695
        %v821 = vpow.pop %v820
        %v822 = vmul.f32 %v787, 1.442695
        %v823 = vpow.pop %v822
        %v824 = vmul.f32 %v788, 1.442695
        %v825 = vpow.pop %v824
        %v826 = vmul.f32 %v789, 1.442695
        %v827 = vpow.pop %v826
        %v828 = vmul.f32 %v790, 1.442695
        %v829 = vpow.pop %v828
        %v830 = vmul.f32 %v791, 1.442695
        %v831 = vpow.pop %v830
        %v832 = vmul.f32 %v792, 1.442695
        %v833 = vpow.pop %v832
        %v834 = vmul.f32 %v793, 1.442695
        %v835 = vpow.pop %v834
        %v836 = vmul.f32 %v794, 1.442695
        %v837 = vpow.pop %v836
        %v838 = vmul.f32 %v795, 1.442695
        %v839 = vpow.pop %v838
        %v840 = vmul.f32 %v796, 1.442695
        %v841 = vpow.pop %v840
        %v842 = vmul.f32 %v797, 1.442695
        %v843 = vpow.pop %v842
        %v844 = vmul.f32 %v798, 1.442695
        %v845 = vpow.pop %v844
        %v846 = vmul.f32 %v799, 1.442695
        %v847 = vpow.pop %v846
        %v848 = vmul.f32 %v800, 1.442695
        %v849 = vpow.pop %v848
        %v850 = vmul.f32 %v801, 1.442695
        %v851 = vpow.pop %v850
        %v852 = vmul.f32 %v802, 1.442695
        %v853 = vpow.pop %v852
        %v854 = vmul.f32 %v803, 1.442695
        %v855 = vpow.pop %v854
        %v856 = vmul.f32 %v804, 1.442695
        %v857 = vpow.pop %v856
        %v858 = vmul.f32 %v805, 1.442695
        %v859 = vpow.pop %v858
        %v860 = vmul.f32 %v806, 1.442695
        %v861 = vpow.pop %v860
        %v862 = vmul.f32 %v807, 1.442695
        %v863 = vpow.pop %v862
        %v864 = vmul.f32 %v808, 1.442695
        %v865 = vpow.pop %v864
        %v866 = vmul.f32 %v809, 1.442695
        %v867 = vpow.pop %v866
        %v868 = vmul.f32 %v810, 1.442695
        %v869 = vpow.pop %v868
        %v870 = vmul.f32 %v811, 1.442695
        %v871 = vpow.pop %v870
        %v872 = vmul.f32 %v812, 1.442695
        %v873 = vpow.pop %v872
        %v874 = vmul.f32 %v813, 1.442695
        %v875 = vpow.pop %v874
        %v876 = vmul.f32 %v814, 1.442695
        %v877 = vpow.pop %v876
        %v878 = vmul.f32 %v815, 1.442695
        %v879 = vpow.pop %v878
        %v880 = vadd.f32 %v817, %v819
        %v881 = vadd.f32 %v821, %v823
        %v882 = vadd.f32 %v825, %v827
        %v883 = vadd.f32 %v829, %v831
        %v884 = vadd.f32 %v833, %v835
        %v885 = vadd.f32 %v837, %v839
        %v886 = vadd.f32 %v841, %v843
        %v887 = vadd.f32 %v845, %v847
        %v888 = vadd.f32 %v849, %v851
        %v889 = vadd.f32 %v853, %v855
        %v890 = vadd.f32 %v857, %v859
        %v891 = vadd.f32 %v861, %v863
        %v892 = vadd.f32 %v865, %v867
        %v893 = vadd.f32 %v869, %v871
        %v894 = vadd.f32 %v873, %v875
        %v895 = vadd.f32 %v877, %v879
        %v896 = vld [vmem:[#allocation2] sm:$0xff]
        %v897 = vld [vmem:[#allocation2 + $0x8] sm:$0xff]
        %v898 = vld [vmem:[#allocation2 + $0x10] sm:$0xff]
        %v899 = vld [vmem:[#allocation2 + $0x18] sm:$0xff]
        %v900 = vld [vmem:[#allocation2 + $0x20] sm:$0xff]
        %v901 = vld [vmem:[#allocation2 + $0x28] sm:$0xff]
        %v902 = vld [vmem:[#allocation2 + $0x30] sm:$0xff]
        %v903 = vld [vmem:[#allocation2 + $0x38] sm:$0xff]
        %v904 = vld [vmem:[#allocation2 + $0x40] sm:$0xff]
        %v905 = vld [vmem:[#allocation2 + $0x48] sm:$0xff]
        %v906 = vld [vmem:[#allocation2 + $0x50] sm:$0xff]
        %v907 = vld [vmem:[#allocation2 + $0x58] sm:$0xff]
        %v908 = vld [vmem:[#allocation2 + $0x60] sm:$0xff]
        %v909 = vld [vmem:[#allocation2 + $0x68] sm:$0xff]
        %v910 = vld [vmem:[#allocation2 + $0x70] sm:$0xff]
        %v911 = vld [vmem:[#allocation2 + $0x78] sm:$0xff]
        %v912 = vadd.f32 %v896, %v880
        %v913 = vadd.f32 %v897, %v881
        %v914 = vadd.f32 %v898, %v882
        %v915 = vadd.f32 %v899, %v883
        %v916 = vadd.f32 %v900, %v884
        %v917 = vadd.f32 %v901, %v885
        %v918 = vadd.f32 %v902, %v886
        %v919 = vadd.f32 %v903, %v887
        %v920 = vadd.f32 %v904, %v888
        %v921 = vadd.f32 %v905, %v889
        %v922 = vadd.f32 %v906, %v890
        %v923 = vadd.f32 %v907, %v891
        %v924 = vadd.f32 %v908, %v892
        %v925 = vadd.f32 %v909, %v893
        %v926 = vadd.f32 %v910, %v894
        %v927 = vadd.f32 %v911, %v895
        %928 = vst [vmem:[#allocation2] sm:$0xff] %v912
        %929 = vst [vmem:[#allocation2 + $0x8] sm:$0xff] %v913
        %930 = vst [vmem:[#allocation2 + $0x10] sm:$0xff] %v914
        %931 = vst [vmem:[#allocation2 + $0x18] sm:$0xff] %v915
        %932 = vst [vmem:[#allocation2 + $0x20] sm:$0xff] %v916
        %933 = vst [vmem:[#allocation2 + $0x28] sm:$0xff] %v917
        %934 = vst [vmem:[#allocation2 + $0x30] sm:$0xff] %v918
        %935 = vst [vmem:[#allocation2 + $0x38] sm:$0xff] %v919
        %936 = vst [vmem:[#allocation2 + $0x40] sm:$0xff] %v920
        %937 = vst [vmem:[#allocation2 + $0x48] sm:$0xff] %v921
        %938 = vst [vmem:[#allocation2 + $0x50] sm:$0xff] %v922
        %939 = vst [vmem:[#allocation2 + $0x58] sm:$0xff] %v923
        %940 = vst [vmem:[#allocation2 + $0x60] sm:$0xff] %v924
        %941 = vst [vmem:[#allocation2 + $0x68] sm:$0xff] %v925
        %942 = vst [vmem:[#allocation2 + $0x70] sm:$0xff] %v926
        %943 = vst [vmem:[#allocation2 + $0x78] sm:$0xff] %v927
      $region40: #{tpu_custom_call.1} parent=31 // pred_fallthru
        _
      // Predicated region
      $region41: #{tpu_custom_call.1} parent=31 // pred_check
        %p944 = pneg %p259
      $region42: #{tpu_custom_call.1} parent=31 // pred_check_branch
        %946 = sbr.rel (%p944) target = $region44
      $region43: #{tpu_custom_call.1} parent=31 // pred_region
        %v947 = vld [vmem:[#allocation2] sm:$0xff]
        %v948 = vld [vmem:[#allocation2 + $0x8] sm:$0xff]
        %v949 = vld [vmem:[#allocation2 + $0x10] sm:$0xff]
        %v950 = vld [vmem:[#allocation2 + $0x18] sm:$0xff]
        %v951 = vld [vmem:[#allocation2 + $0x20] sm:$0xff]
        %v952 = vld [vmem:[#allocation2 + $0x28] sm:$0xff]
        %v953 = vld [vmem:[#allocation2 + $0x30] sm:$0xff]
        %v954 = vld [vmem:[#allocation2 + $0x38] sm:$0xff]
        %v955 = vld [vmem:[#allocation2 + $0x40] sm:$0xff]
        %v956 = vld [vmem:[#allocation2 + $0x48] sm:$0xff]
        %v957 = vld [vmem:[#allocation2 + $0x50] sm:$0xff]
        %v958 = vld [vmem:[#allocation2 + $0x58] sm:$0xff]
        %v959 = vld [vmem:[#allocation2 + $0x60] sm:$0xff]
        %v960 = vld [vmem:[#allocation2 + $0x68] sm:$0xff]
        %v961 = vld [vmem:[#allocation2 + $0x70] sm:$0xff]
        %v962 = vld [vmem:[#allocation2 + $0x78] sm:$0xff]
        %963 = vadd.xlane.f32.xlu0 %v947
        %v964 = vpop.xlane.xlu0 %963
        %965 = vadd.xlane.f32.xlu0 %v948
        %v966 = vpop.xlane.xlu0 %965
        %967 = vadd.xlane.f32.xlu0 %v949
        %v968 = vpop.xlane.xlu0 %967
        %969 = vadd.xlane.f32.xlu0 %v950
        %v970 = vpop.xlane.xlu0 %969
        %971 = vadd.xlane.f32.xlu0 %v951
        %v972 = vpop.xlane.xlu0 %971
        %973 = vadd.xlane.f32.xlu0 %v952
        %v974 = vpop.xlane.xlu0 %973
        %975 = vadd.xlane.f32.xlu0 %v953
        %v976 = vpop.xlane.xlu0 %975
        %977 = vadd.xlane.f32.xlu0 %v954
        %v978 = vpop.xlane.xlu0 %977
        %979 = vadd.xlane.f32.xlu0 %v955
        %v980 = vpop.xlane.xlu0 %979
        %981 = vadd.xlane.f32.xlu0 %v956
        %v982 = vpop.xlane.xlu0 %981
        %983 = vadd.xlane.f32.xlu0 %v957
        %v984 = vpop.xlane.xlu0 %983
        %985 = vadd.xlane.f32.xlu0 %v958
        %v986 = vpop.xlane.xlu0 %985
        %987 = vadd.xlane.f32.xlu0 %v959
        %v988 = vpop.xlane.xlu0 %987
        %989 = vadd.xlane.f32.xlu0 %v960
        %v990 = vpop.xlane.xlu0 %989
        %991 = vadd.xlane.f32.xlu0 %v961
        %v992 = vpop.xlane.xlu0 %991
        %993 = vadd.xlane.f32.xlu0 %v962
        %v994 = vpop.xlane.xlu0 %993
        %v995 = vld [vmem:[%s251] sm:$0xff]
        %v996 = vld [vmem:[%s251 + $0x8] sm:$0xff]
        %v997 = vld [vmem:[%s251 + $0x10] sm:$0xff]
        %v998 = vld [vmem:[%s251 + $0x18] sm:$0xff]
        %v999 = vld [vmem:[%s251 + $0x20] sm:$0xff]
        %v1000 = vld [vmem:[%s251 + $0x28] sm:$0xff]
        %v1001 = vld [vmem:[%s251 + $0x30] sm:$0xff]
        %v1002 = vld [vmem:[%s251 + $0x38] sm:$0xff]
        %v1003 = vld [vmem:[%s251 + $0x40] sm:$0xff]
        %v1004 = vld [vmem:[%s251 + $0x48] sm:$0xff]
        %v1005 = vld [vmem:[%s251 + $0x50] sm:$0xff]
        %v1006 = vld [vmem:[%s251 + $0x58] sm:$0xff]
        %v1007 = vld [vmem:[%s251 + $0x60] sm:$0xff]
        %v1008 = vld [vmem:[%s251 + $0x68] sm:$0xff]
        %v1009 = vld [vmem:[%s251 + $0x70] sm:$0xff]
        %v1010 = vld [vmem:[%s251 + $0x78] sm:$0xff]
        %v1011 = vrcp.pop %v964
        %v1012 = vmul.f32 %v964, %v1011
        %v1013 = vsub.f32 1.0, %v1012
        %v1014 = vmul.f32 %v1011, %v1013
        %v1015 = vadd.f32 %v1011, %v1014
        %vm1016 = vweird.f32 %v964
        %vm1017 = vweird.f32 %v1011
        %vm1018 = vmor %vm1016, %vm1017
        %v1019 = vsel %vm1018, %v1011, %v1015
        %v1020 = vand.u32 2147483647, %v964
        %vm1021 = vcmp.eq.f32.partialorder %v1020, 8.507059e+37
        %v1022 = vand.u32 %v964, 2147483648
        %v1023 = vor.u32 1.1754944e-38, %v1022
        %v1024 = vsel %vm1021, %v1023, %v1019
        %v1025 = vrcp.pop %v966
        %v1026 = vmul.f32 %v966, %v1025
        %v1027 = vsub.f32 1.0, %v1026
        %v1028 = vmul.f32 %v1025, %v1027
        %v1029 = vadd.f32 %v1025, %v1028
        %vm1030 = vweird.f32 %v966
        %vm1031 = vweird.f32 %v1025
        %vm1032 = vmor %vm1030, %vm1031
        %v1033 = vsel %vm1032, %v1025, %v1029
        %v1034 = vand.u32 2147483647, %v966
        %vm1035 = vcmp.eq.f32.partialorder %v1034, 8.507059e+37
        %v1036 = vand.u32 %v966, 2147483648
        %v1037 = vor.u32 1.1754944e-38, %v1036
        %v1038 = vsel %vm1035, %v1037, %v1033
        %v1039 = vrcp.pop %v968
        %v1040 = vmul.f32 %v968, %v1039
        %v1041 = vsub.f32 1.0, %v1040
        %v1042 = vmul.f32 %v1039, %v1041
        %v1043 = vadd.f32 %v1039, %v1042
        %vm1044 = vweird.f32 %v968
        %vm1045 = vweird.f32 %v1039
        %vm1046 = vmor %vm1044, %vm1045
        %v1047 = vsel %vm1046, %v1039, %v1043
        %v1048 = vand.u32 2147483647, %v968
        %vm1049 = vcmp.eq.f32.partialorder %v1048, 8.507059e+37
        %v1050 = vand.u32 %v968, 2147483648
        %v1051 = vor.u32 1.1754944e-38, %v1050
        %v1052 = vsel %vm1049, %v1051, %v1047
        %v1053 = vrcp.pop %v970
        %v1054 = vmul.f32 %v970, %v1053
        %v1055 = vsub.f32 1.0, %v1054
        %v1056 = vmul.f32 %v1053, %v1055
        %v1057 = vadd.f32 %v1053, %v1056
        %vm1058 = vweird.f32 %v970
        %vm1059 = vweird.f32 %v1053
        %vm1060 = vmor %vm1058, %vm1059
        %v1061 = vsel %vm1060, %v1053, %v1057
        %v1062 = vand.u32 2147483647, %v970
        %vm1063 = vcmp.eq.f32.partialorder %v1062, 8.507059e+37
        %v1064 = vand.u32 %v970, 2147483648
        %v1065 = vor.u32 1.1754944e-38, %v1064
        %v1066 = vsel %vm1063, %v1065, %v1061
        %v1067 = vrcp.pop %v972
        %v1068 = vmul.f32 %v972, %v1067
        %v1069 = vsub.f32 1.0, %v1068
        %v1070 = vmul.f32 %v1067, %v1069
        %v1071 = vadd.f32 %v1067, %v1070
        %vm1072 = vweird.f32 %v972
        %vm1073 = vweird.f32 %v1067
        %vm1074 = vmor %vm1072, %vm1073
        %v1075 = vsel %vm1074, %v1067, %v1071
        %v1076 = vand.u32 2147483647, %v972
        %vm1077 = vcmp.eq.f32.partialorder %v1076, 8.507059e+37
        %v1078 = vand.u32 %v972, 2147483648
        %v1079 = vor.u32 1.1754944e-38, %v1078
        %v1080 = vsel %vm1077, %v1079, %v1075
        %v1081 = vrcp.pop %v974
        %v1082 = vmul.f32 %v974, %v1081
        %v1083 = vsub.f32 1.0, %v1082
        %v1084 = vmul.f32 %v1081, %v1083
        %v1085 = vadd.f32 %v1081, %v1084
        %vm1086 = vweird.f32 %v974
        %vm1087 = vweird.f32 %v1081
        %vm1088 = vmor %vm1086, %vm1087
        %v1089 = vsel %vm1088, %v1081, %v1085
        %v1090 = vand.u32 2147483647, %v974
        %vm1091 = vcmp.eq.f32.partialorder %v1090, 8.507059e+37
        %v1092 = vand.u32 %v974, 2147483648
        %v1093 = vor.u32 1.1754944e-38, %v1092
        %v1094 = vsel %vm1091, %v1093, %v1089
        %v1095 = vrcp.pop %v976
        %v1096 = vmul.f32 %v976, %v1095
        %v1097 = vsub.f32 1.0, %v1096
        %v1098 = vmul.f32 %v1095, %v1097
        %v1099 = vadd.f32 %v1095, %v1098
        %vm1100 = vweird.f32 %v976
        %vm1101 = vweird.f32 %v1095
        %vm1102 = vmor %vm1100, %vm1101
        %v1103 = vsel %vm1102, %v1095, %v1099
        %v1104 = vand.u32 2147483647, %v976
        %vm1105 = vcmp.eq.f32.partialorder %v1104, 8.507059e+37
        %v1106 = vand.u32 %v976, 2147483648
        %v1107 = vor.u32 1.1754944e-38, %v1106
        %v1108 = vsel %vm1105, %v1107, %v1103
        %v1109 = vrcp.pop %v978
        %v1110 = vmul.f32 %v978, %v1109
        %v1111 = vsub.f32 1.0, %v1110
        %v1112 = vmul.f32 %v1109, %v1111
        %v1113 = vadd.f32 %v1109, %v1112
        %vm1114 = vweird.f32 %v978
        %vm1115 = vweird.f32 %v1109
        %vm1116 = vmor %vm1114, %vm1115
        %v1117 = vsel %vm1116, %v1109, %v1113
        %v1118 = vand.u32 2147483647, %v978
        %vm1119 = vcmp.eq.f32.partialorder %v1118, 8.507059e+37
        %v1120 = vand.u32 %v978, 2147483648
        %v1121 = vor.u32 1.1754944e-38, %v1120
        %v1122 = vsel %vm1119, %v1121, %v1117
        %v1123 = vrcp.pop %v980
        %v1124 = vmul.f32 %v980, %v1123
        %v1125 = vsub.f32 1.0, %v1124
        %v1126 = vmul.f32 %v1123, %v1125
        %v1127 = vadd.f32 %v1123, %v1126
        %vm1128 = vweird.f32 %v980
        %vm1129 = vweird.f32 %v1123
        %vm1130 = vmor %vm1128, %vm1129
        %v1131 = vsel %vm1130, %v1123, %v1127
        %v1132 = vand.u32 2147483647, %v980
        %vm1133 = vcmp.eq.f32.partialorder %v1132, 8.507059e+37
        %v1134 = vand.u32 %v980, 2147483648
        %v1135 = vor.u32 1.1754944e-38, %v1134
        %v1136 = vsel %vm1133, %v1135, %v1131
        %v1137 = vrcp.pop %v982
        %v1138 = vmul.f32 %v982, %v1137
        %v1139 = vsub.f32 1.0, %v1138
        %v1140 = vmul.f32 %v1137, %v1139
        %v1141 = vadd.f32 %v1137, %v1140
        %vm1142 = vweird.f32 %v982
        %vm1143 = vweird.f32 %v1137
        %vm1144 = vmor %vm1142, %vm1143
        %v1145 = vsel %vm1144, %v1137, %v1141
        %v1146 = vand.u32 2147483647, %v982
        %vm1147 = vcmp.eq.f32.partialorder %v1146, 8.507059e+37
        %v1148 = vand.u32 %v982, 2147483648
        %v1149 = vor.u32 1.1754944e-38, %v1148
        %v1150 = vsel %vm1147, %v1149, %v1145
        %v1151 = vrcp.pop %v984
        %v1152 = vmul.f32 %v984, %v1151
        %v1153 = vsub.f32 1.0, %v1152
        %v1154 = vmul.f32 %v1151, %v1153
        %v1155 = vadd.f32 %v1151, %v1154
        %vm1156 = vweird.f32 %v984
        %vm1157 = vweird.f32 %v1151
        %vm1158 = vmor %vm1156, %vm1157
        %v1159 = vsel %vm1158, %v1151, %v1155
        %v1160 = vand.u32 2147483647, %v984
        %vm1161 = vcmp.eq.f32.partialorder %v1160, 8.507059e+37
        %v1162 = vand.u32 %v984, 2147483648
        %v1163 = vor.u32 1.1754944e-38, %v1162
        %v1164 = vsel %vm1161, %v1163, %v1159
        %v1165 = vrcp.pop %v986
        %v1166 = vmul.f32 %v986, %v1165
        %v1167 = vsub.f32 1.0, %v1166
        %v1168 = vmul.f32 %v1165, %v1167
        %v1169 = vadd.f32 %v1165, %v1168
        %vm1170 = vweird.f32 %v986
        %vm1171 = vweird.f32 %v1165
        %vm1172 = vmor %vm1170, %vm1171
        %v1173 = vsel %vm1172, %v1165, %v1169
        %v1174 = vand.u32 2147483647, %v986
        %vm1175 = vcmp.eq.f32.partialorder %v1174, 8.507059e+37
        %v1176 = vand.u32 %v986, 2147483648
        %v1177 = vor.u32 1.1754944e-38, %v1176
        %v1178 = vsel %vm1175, %v1177, %v1173
        %v1179 = vrcp.pop %v988
        %v1180 = vmul.f32 %v988, %v1179
        %v1181 = vsub.f32 1.0, %v1180
        %v1182 = vmul.f32 %v1179, %v1181
        %v1183 = vadd.f32 %v1179, %v1182
        %vm1184 = vweird.f32 %v988
        %vm1185 = vweird.f32 %v1179
        %vm1186 = vmor %vm1184, %vm1185
        %v1187 = vsel %vm1186, %v1179, %v1183
        %v1188 = vand.u32 2147483647, %v988
        %vm1189 = vcmp.eq.f32.partialorder %v1188, 8.507059e+37
        %v1190 = vand.u32 %v988, 2147483648
        %v1191 = vor.u32 1.1754944e-38, %v1190
        %v1192 = vsel %vm1189, %v1191, %v1187
        %v1193 = vrcp.pop %v990
        %v1194 = vmul.f32 %v990, %v1193
        %v1195 = vsub.f32 1.0, %v1194
        %v1196 = vmul.f32 %v1193, %v1195
        %v1197 = vadd.f32 %v1193, %v1196
        %vm1198 = vweird.f32 %v990
        %vm1199 = vweird.f32 %v1193
        %vm1200 = vmor %vm1198, %vm1199
        %v1201 = vsel %vm1200, %v1193, %v1197
        %v1202 = vand.u32 2147483647, %v990
        %vm1203 = vcmp.eq.f32.partialorder %v1202, 8.507059e+37
        %v1204 = vand.u32 %v990, 2147483648
        %v1205 = vor.u32 1.1754944e-38, %v1204
        %v1206 = vsel %vm1203, %v1205, %v1201
        %v1207 = vrcp.pop %v992
        %v1208 = vmul.f32 %v992, %v1207
        %v1209 = vsub.f32 1.0, %v1208
        %v1210 = vmul.f32 %v1207, %v1209
        %v1211 = vadd.f32 %v1207, %v1210
        %vm1212 = vweird.f32 %v992
        %vm1213 = vweird.f32 %v1207
        %vm1214 = vmor %vm1212, %vm1213
        %v1215 = vsel %vm1214, %v1207, %v1211
        %v1216 = vand.u32 2147483647, %v992
        %vm1217 = vcmp.eq.f32.partialorder %v1216, 8.507059e+37
        %v1218 = vand.u32 %v992, 2147483648
        %v1219 = vor.u32 1.1754944e-38, %v1218
        %v1220 = vsel %vm1217, %v1219, %v1215
        %v1221 = vrcp.pop %v994
        %v1222 = vmul.f32 %v994, %v1221
        %v1223 = vsub.f32 1.0, %v1222
        %v1224 = vmul.f32 %v1221, %v1223
        %v1225 = vadd.f32 %v1221, %v1224
        %vm1226 = vweird.f32 %v994
        %vm1227 = vweird.f32 %v1221
        %vm1228 = vmor %vm1226, %vm1227
        %v1229 = vsel %vm1228, %v1221, %v1225
        %v1230 = vand.u32 2147483647, %v994
        %vm1231 = vcmp.eq.f32.partialorder %v1230, 8.507059e+37
        %v1232 = vand.u32 %v994, 2147483648
        %v1233 = vor.u32 1.1754944e-38, %v1232
        %v1234 = vsel %vm1231, %v1233, %v1229
        %v1235 = vmul.f32 %v995, %v1024
        %v1236 = vmul.f32 %v996, %v1038
        %v1237 = vmul.f32 %v997, %v1052
        %v1238 = vmul.f32 %v998, %v1066
        %v1239 = vmul.f32 %v999, %v1080
        %v1240 = vmul.f32 %v1000, %v1094
        %v1241 = vmul.f32 %v1001, %v1108
        %v1242 = vmul.f32 %v1002, %v1122
        %v1243 = vmul.f32 %v1003, %v1136
        %v1244 = vmul.f32 %v1004, %v1150
        %v1245 = vmul.f32 %v1005, %v1164
        %v1246 = vmul.f32 %v1006, %v1178
        %v1247 = vmul.f32 %v1007, %v1192
        %v1248 = vmul.f32 %v1008, %v1206
        %v1249 = vmul.f32 %v1009, %v1220
        %v1250 = vmul.f32 %v1010, %v1234
        %vm1251 = vcmask 7168
        %1252 = vst.msk [vmem:[%s257] sm:$0xff] %vm1251, %v1235
        %1253 = vst.msk [vmem:[%s257 + $0x8] sm:$0xff] %vm1251, %v1236
        %1254 = vst.msk [vmem:[%s257 + $0x10] sm:$0xff] %vm1251, %v1237
        %1255 = vst.msk [vmem:[%s257 + $0x18] sm:$0xff] %vm1251, %v1238
        %1256 = vst.msk [vmem:[%s257 + $0x20] sm:$0xff] %vm1251, %v1239
        %1257 = vst.msk [vmem:[%s257 + $0x28] sm:$0xff] %vm1251, %v1240
        %1258 = vst.msk [vmem:[%s257 + $0x30] sm:$0xff] %vm1251, %v1241
        %1259 = vst.msk [vmem:[%s257 + $0x38] sm:$0xff] %vm1251, %v1242
        %1260 = vst.msk [vmem:[%s257 + $0x40] sm:$0xff] %vm1251, %v1243
        %1261 = vst.msk [vmem:[%s257 + $0x48] sm:$0xff] %vm1251, %v1244
        %1262 = vst.msk [vmem:[%s257 + $0x50] sm:$0xff] %vm1251, %v1245
        %1263 = vst.msk [vmem:[%s257 + $0x58] sm:$0xff] %vm1251, %v1246
        %1264 = vst.msk [vmem:[%s257 + $0x60] sm:$0xff] %vm1251, %v1247
        %1265 = vst.msk [vmem:[%s257 + $0x68] sm:$0xff] %vm1251, %v1248
        %1266 = vst.msk [vmem:[%s257 + $0x70] sm:$0xff] %vm1251, %v1249
        %1267 = vst.msk [vmem:[%s257 + $0x78] sm:$0xff] %vm1251, %v1250
      $region44: #{tpu_custom_call.1} parent=31 // pred_fallthru
        _
      %s1268 = smul.u32 16, %s33
      %p1269 = scmp.lt.s32.totalorder %s1268, 63
      %s1270 = scalar_select %p1269, %s1268, 63
      %s1271 = smul.addr %s1270, 8
      %s1272 = scalar_lea.vmem %s5, %s1271
      // Predicated region
      $region45: #{tpu_custom_call.1} parent=31 // pred_check
        %p1273 = pneg %p141
      $region46: #{tpu_custom_call.1} parent=31 // pred_check_branch
        %1275 = sbr.rel (%p1273) target = $region48
      $region47: #{tpu_custom_call.1} parent=31 // pred_region
        %s1276 = smul.u32 16, %s33
      $region48: #{tpu_custom_call.1} parent=31 // pred_fallthru
        _
    $region32: #{tpu_custom_call.1} parent=5 // pred_fallthru
      _
    %p1277 = scmp.le.s32.totalorder 2, %s24
    // Predicated region
    $region49: #{tpu_custom_call.1} parent=5 // pred_check
      %p1278 = pneg %p1277
    $region50: #{tpu_custom_call.1} parent=5 // pred_check_branch
      %1280 = sbr.rel (%p1278) target = $region52
    $region51: #{tpu_custom_call.1} parent=5 // pred_region
      %s1281 = ssub.s32 %s24, 2
      // Predicated region
      $region53: #{tpu_custom_call.1} parent=51 // pred_check
        %p1282 = pneg %p147
      $region54: #{tpu_custom_call.1} parent=51 // pred_check_branch
        %1284 = sbr.rel (%p1282) target = $region56
      $region55: #{tpu_custom_call.1} parent=51 // pred_region
        %s1285 = smul.u32 16, %s35
        %p1286 = scmp.lt.s32.totalorder %s1285, 63
        %s1287 = scalar_select %p1286, %s1285, 63
        %s1288 = smul.addr %s1287, 8
        %s1289 = scalar_lea.vmem %s5, %s1288
      $region56: #{tpu_custom_call.1} parent=51 // pred_fallthru
        _
    $region52: #{tpu_custom_call.1} parent=5 // pred_fallthru
      _
  $region6: #{tpu_custom_call.1} parent=0 // loop_footer
    %s28 = sadd.s32 1, %s24
  $region7: #{tpu_custom_call.1} parent=0 // loop_footer_branch
    %23 = sbr.rel target = $region3
  $region8: #{tpu_custom_call.1} parent=0 // loop_exit
    _

</llo_original>
